<compile_context>
chip_gen: v7x
topology: tpu7x:2x2x1
jax: 0.10.0
libtpu: 0.0.40
codegen_flags: <defaults>
</compile_context>

<pallas_src>
import jax
import jax.numpy as jnp
from jax.experimental import pallas as pl
from jax.experimental.pallas import tpu as pltpu

_LANES = 128
_SUBLANES = 8


def _cdiv(a, b):
    return -(-a // b)


def _round_up(a, b):
    return _cdiv(a, b) * b


def _clip_boxes_kernel(x_ref, lo_ref, hi_ref, o_ref):
    # Single fused clamp: lo/hi are (1, 128) per-lane bound vectors that
    # broadcast over the (block_rows, 128) tile.
    o_ref[...] = jnp.minimum(jnp.maximum(x_ref[...], lo_ref[...]), hi_ref[...])


def clip_boxes(boxes, img, *, max_block_rows=512):
    """Pallas equivalent of ClipBoxes.forward(boxes, img)."""
    B, N, C4 = boxes.shape
    assert C4 == 4, "boxes last dim must be 4 (x1, y1, x2, y2)"
    _, _, height, width = img.shape  # NCHW; only the static shape is used
    dtype = boxes.dtype

    # ---- choose a lane-dense tiling over the flattened tensor ----
    total = B * N * 4
    rows_min = _round_up(_cdiv(total, _LANES), _SUBLANES)

    block_rows = min(max_block_rows, rows_min)
    # Prefer >= 2 grid steps when there's enough data (v7x has 2 TensorCores).
    if block_rows == rows_min and rows_min >= 2 * _SUBLANES:
        block_rows = _round_up(_cdiv(rows_min, 2), _SUBLANES)

    rows = _round_up(rows_min, block_rows)
    grid_rows = rows // block_rows
    padded_total = rows * _LANES

    # ---- flatten + pad to (rows, 128); lane j of any row is coord j % 4 ----
    flat = boxes.reshape(total)
    if padded_total != total:
        flat = jnp.pad(flat, (0, padded_total - total))
    x2d = flat.reshape(rows, _LANES)

    # Per-lane clamp bounds, built once in the wrapper.
    lo = jnp.tile(
        jnp.array([0.0, 0.0, -jnp.inf, -jnp.inf], dtype=dtype), _LANES // 4
    ).reshape(1, _LANES)
    hi = jnp.tile(
        jnp.array([jnp.inf, jnp.inf, float(width), float(height)], dtype=dtype),
        _LANES // 4,
    ).reshape(1, _LANES)

    out2d = pl.pallas_call(
        _clip_boxes_kernel,
        out_shape=jax.ShapeDtypeStruct((rows, _LANES), dtype),
        grid=(grid_rows,),
        in_specs=[
            pl.BlockSpec((block_rows, _LANES), lambda i: (i, 0)),
            pl.BlockSpec((1, _LANES), lambda i: (0, 0)),
            pl.BlockSpec((1, _LANES), lambda i: (0, 0)),
        ],
        out_specs=pl.BlockSpec((block_rows, _LANES), lambda i: (i, 0)),
        input_output_aliases={0: 0},  # write clipped boxes over the padded input buffer
        compiler_params=pltpu.CompilerParams(
            dimension_semantics=("parallel",),
        ),
    )(x2d, lo, hi)

    return out2d.reshape(-1)[:total].reshape(B, N, 4)


def _reference_clip_boxes(boxes, img):
    """Pure-JAX reference mirroring the PyTorch forward."""
    _, _, height, width = img.shape
    x1 = jnp.maximum(boxes[:, :, 0], 0.0)
    y1 = jnp.maximum(boxes[:, :, 1], 0.0)
    x2 = jnp.minimum(boxes[:, :, 2], float(width))
    y2 = jnp.minimum(boxes[:, :, 3], float(height))
    return jnp.stack([x1, y1, x2, y2], axis=-1)


if __name__ == "__main__":
    key = jax.random.PRNGKey(0)
    kb, ki = jax.random.split(key)

    B, N = 2, 8          # batch=2, 8 boxes per image
    C, H, W = 4, 16, 16  # img: NCHW

    # boxes spread around [-8, 24] so clamping on both ends actually triggers
    boxes = jax.random.uniform(
        kb, (B, N, 4), dtype=jnp.float32, minval=-8.0, maxval=24.0
    )
    img = jax.random.normal(ki, (B, C, H, W), dtype=jnp.float32)

    out = clip_boxes(boxes, img)
    out = jax.block_until_ready(out)

    ref = _reference_clip_boxes(boxes, img)
    assert out.shape == boxes.shape and out.dtype == boxes.dtype
    assert jnp.allclose(out, ref, atol=0.0, rtol=0.0), "mismatch vs reference"

    print("KERNEL_OK")
</pallas_src>

<mosaic_0001>
module attributes {stable_mosaic.version = 11 : i64} {
  func.func @_clip_boxes_kernel(%arg0: i32, %arg1: memref<8x128xf32, #tpu.memory_space<vmem>>, %arg2: memref<1x128xf32, #tpu.memory_space<vmem>>, %arg3: memref<1x128xf32, #tpu.memory_space<vmem>>, %arg4: memref<8x128xf32, #tpu.memory_space<vmem>>) attributes {dimension_semantics = [#tpu.dimension_semantics<parallel>], iteration_bounds = array<i64: 1>, scalar_prefetch = 0 : i64, scratch_operands = 0 : i64, tpu.core_type = #tpu.core_type<tc>, window_params = [{transform_indices = @transform_0, window_bounds = array<i64: 8, 128>}, {pipeline_mode = #tpu.pipeline_mode<synchronous>, transform_indices = @transform_1, window_bounds = array<i64: 1, 128>}, {pipeline_mode = #tpu.pipeline_mode<synchronous>, transform_indices = @transform_2, window_bounds = array<i64: 1, 128>}, {transform_indices = @transform_3, window_bounds = array<i64: 8, 128>}]} {
    %c0 = arith.constant 0 : index
    %c0_0 = arith.constant 0 : index
    %0 = vector.load %arg1[%c0, %c0_0] : memref<8x128xf32, #tpu.memory_space<vmem>>, vector<8x128xf32>
    %c0_1 = arith.constant 0 : index
    %c0_2 = arith.constant 0 : index
    %1 = vector.load %arg2[%c0_1, %c0_2] : memref<1x128xf32, #tpu.memory_space<vmem>>, vector<1x128xf32>
    %2 = vector.broadcast %1 : vector<1x128xf32> to vector<8x128xf32>
    %3 = arith.maximumf %0, %2 : vector<8x128xf32>
    %c0_3 = arith.constant 0 : index
    %c0_4 = arith.constant 0 : index
    %4 = vector.load %arg3[%c0_3, %c0_4] : memref<1x128xf32, #tpu.memory_space<vmem>>, vector<1x128xf32>
    %5 = vector.broadcast %4 : vector<1x128xf32> to vector<8x128xf32>
    %6 = arith.minimumf %3, %5 : vector<8x128xf32>
    %c0_5 = arith.constant 0 : index
    %c0_6 = arith.constant 0 : index
    %7 = vector.load %arg4[%c0_5, %c0_6] : memref<8x128xf32, #tpu.memory_space<vmem>>, vector<8x128xf32>
    tpu.vector_store %arg4[%c0_5, %c0_6], %6 {strides = array<i32>} : memref<8x128xf32, #tpu.memory_space<vmem>>, vector<8x128xf32>,
    return
  }
  func.func @transform_0(%arg0: i32) -> (i32, i32) {
    %c0_i32 = arith.constant 0 : i32
    %c0_i32_0 = arith.constant 0 : i32
    return %arg0, %c0_i32 : i32, i32
  }
  func.func @transform_1(%arg0: i32) -> (i32, i32) {
    %c0_i32 = arith.constant 0 : i32
    %c0_i32_0 = arith.constant 0 : i32
    %c0_i32_1 = arith.constant 0 : i32
    return %c0_i32, %c0_i32_0 : i32, i32
  }
  func.func @transform_2(%arg0: i32) -> (i32, i32) {
    %c0_i32 = arith.constant 0 : i32
    %c0_i32_0 = arith.constant 0 : i32
    %c0_i32_1 = arith.constant 0 : i32
    return %c0_i32, %c0_i32_0 : i32, i32
  }
  func.func @transform_3(%arg0: i32) -> (i32, i32) {
    %c0_i32 = arith.constant 0 : i32
    %c0_i32_0 = arith.constant 0 : i32
    return %arg0, %c0_i32 : i32, i32
  }
}

</mosaic_0001>

<llo_original>
// kernel: tpu_custom_call.1
$region0: #{tpu_custom_call.1}
  #allocation0 [shape = 'u32[]', space=smem, size = 0x4, offset = 0x4, fixed_abs, tag = 'smem constant byte address 0x4 - core index']
  #allocation1 [shape = 'u32[144,128]{1,0:T(1,128)}', space=vmem, size = 0x12000, scoped, tag = 'internal scratch']
  %s0 = inlined_call_operand.hbm [shape: f32[8,128], index: 0, kind: input, shape index: {}, may-alias: {0,3}]
  %s1 = inlined_call_operand.vmem [shape: f32[1,128], index: 1, kind: input, shape index: {}]
  %s2 = inlined_call_operand.vmem [shape: f32[1,128], index: 2, kind: input, shape index: {}]
  %s3 = inlined_call_operand.hbm [shape: f32[8,128], index: 3, kind: output, shape index: {}, may-alias: {0,3}]
  %s4 = sld [smem:[#allocation0]]
  $region26: #{tpu_custom_call.1} parent=0
    _
  %s6 = ssub.s32 1, %s4
  %s7 = scalar_select 0, %s6, %s4
  $region1: #{tpu_custom_call.1} parent=0
    #allocation2 [shape = 'u8[4096]{0}', space=vmem, size = 0x1000, scoped, tag = 'input window, operand 0, single buffered']
    #allocation3 [shape = 's32[1]{0}', space=sflag, size = 0x4, scoped, tag = 'scoped memory for tpu_custom_call.1']
    #allocation4 [shape = 's32[1]{0}', space=sflag, size = 0x4, scoped, tag = 'scoped memory for tpu_custom_call.1']
    #allocation5 [shape = 'u8[4096]{0}', space=vmem, size = 0x1000, scoped, tag = 'output window, operand 0, single buffered']
    %8 = vsyncpa [#allocation3], 0
    %9 = vsyncpa [#allocation4], 0
    // Predicated region
    $region2: #{tpu_custom_call.1} parent=1 // pred_check
      _
    $region3: #{tpu_custom_call.1} parent=1 // pred_check_branch
      %11 = sbr.rel (0) target = $region5
    $region4: #{tpu_custom_call.1} parent=1 // pred_region
      %s13 = ssub.s32 128, 128
      %14 = vsyncadd [#allocation3], %s13
      %s16 = sshll.u32 [#allocation2], 4
      %s17 = int_to_ptr.vmem [resolvable:$true] %s16
      %19 = dma.hbm_to_vmem [thread:$0]  %s0, 128, %s17, [#allocation3]
    $region5: #{tpu_custom_call.1} parent=1 // pred_fallthru
      _
    // Predicated region
    $region6: #{tpu_custom_call.1} parent=1 // pred_check
      _
    $region7: #{tpu_custom_call.1} parent=1 // pred_check_branch
      %21 = sbr.rel (0) target = $region9
    $region8: #{tpu_custom_call.1} parent=1 // pred_region
      _
    $region9: #{tpu_custom_call.1} parent=1 // pred_fallthru
      _
    // Predicated region
    $region10: #{tpu_custom_call.1} parent=1 // pred_check
      _
    $region11: #{tpu_custom_call.1} parent=1 // pred_check_branch
      %23 = sbr.rel (0) target = $region13
    $region12: #{tpu_custom_call.1} parent=1 // pred_region
      _
    $region13: #{tpu_custom_call.1} parent=1 // pred_fallthru
      _
    // Predicated region
    $region14: #{tpu_custom_call.1} parent=1 // pred_check
      _
    $region15: #{tpu_custom_call.1} parent=1 // pred_check_branch
      %25 = sbr.rel (0) target = $region17
    $region16: #{tpu_custom_call.1} parent=1 // pred_region
      %26 = dma.done [#allocation3], 128
    $region17: #{tpu_custom_call.1} parent=1 // pred_fallthru
      _
    %v27 = vld [vmem:[#allocation2] sm:$0xff]
    %v28 = vld [vmem:[%s1] sm:$0x1]
    %v30 = vlaneseq
    %v31 = vshrl.u32 %v30, 7
    %v32 = vsub.s32 0, %v31
    %v33 = vrot.slane %v28, %v32
    %v35 = vmax.f32 %v27, %v33
    %v36 = vld [vmem:[%s2] sm:$0x1]
    %v38 = vlaneseq
    %v39 = vshrl.u32 %v38, 7
    %v40 = vsub.s32 0, %v39
    %v41 = vrot.slane %v36, %v40
    %v43 = vmin.f32 %v35, %v41
    %44 = vst [vmem:[#allocation5] sm:$0xff] %v43
    // Predicated region
    $region18: #{tpu_custom_call.1} parent=1 // pred_check
      _
    $region19: #{tpu_custom_call.1} parent=1 // pred_check_branch
      %46 = sbr.rel (0) target = $region21
    $region20: #{tpu_custom_call.1} parent=1 // pred_region
      %s48 = ssub.s32 128, 128
      %49 = vsyncadd [#allocation4], %s48
      %s51 = sshll.u32 [#allocation5], 4
      %s52 = int_to_ptr.vmem [resolvable:$true] %s51
      %54 = dma.vmem_to_hbm [thread:$0]  %s52, 128, %s3, [#allocation4]
    $region21: #{tpu_custom_call.1} parent=1 // pred_fallthru
      _
    // Predicated region
    $region22: #{tpu_custom_call.1} parent=1 // pred_check
      _
    $region23: #{tpu_custom_call.1} parent=1 // pred_check_branch
      %56 = sbr.rel (0) target = $region25
    $region24: #{tpu_custom_call.1} parent=1 // pred_region
      %57 = dma.done [#allocation4], 128
    $region25: #{tpu_custom_call.1} parent=1 // pred_fallthru
      _
    %58 = vsyncpa [#allocation3], 1
    %59 = vsyncpa [#allocation4], 1

</llo_original>
